<compile_context>
chip_gen: v7x
topology: tpu7x:2x2x1
jax: 0.10.0
libtpu: 0.0.40
codegen_flags: <defaults>
</compile_context>

<pallas_src>
import functools

import jax
import jax.numpy as jnp
from jax.experimental import pallas as pl
from jax.experimental.pallas import tpu as pltpu


def _round_up(a: int, b: int) -> int:
    return (a + b - 1) // b * b


def lstm_fused_kernel(xT_ref, w_ref, hc_out_ref, *, num_layers: int, hidden: int):
    """All num_layers cell applications for one row-tile, transposed layout.

    xT_ref:     [H, m_tile]   activation rows (batch*seq) on the lane axis
    w_ref:      [4H, 2H]      packed weights; rows = gates (forget, input,
                              output, cell), columns = [Wx^T | Wh^T]
    hc_out_ref: [2H, m_tile]  rows 0:H = final h, rows H:2H = final c
    """
    H = hidden
    xT = xT_ref[...]                 # [H, m]
    w = w_ref[...]                   # [4H, 2H], resident across all layers

    # ---- layer 0 peeled: h0 = c0 = 0 -> skip Wh contraction and f*c term ----
    z = jnp.dot(w[:, :H], xT, preferred_element_type=jnp.float32)   # [4H, m]
    g = jax.nn.sigmoid(z)            # all 4 gates at once, lane-dense
    i_g = g[1 * H:2 * H, :]
    o_g = g[2 * H:3 * H, :]
    c_g = g[3 * H:4 * H, :]          # cell gate uses sigmoid (faithful to source)
    c = i_g * c_g
    h = o_g * jnp.tanh(c)
    x = h                            # cell returns (h, (h, c)); x <- h

    # ---- remaining layers: fused [x; h] contraction (K = 2H) ----
    # num_layers is a small static constant -> unrolled at trace time.
    for _ in range(num_layers - 1):
        s = jnp.concatenate([x, h], axis=0)                          # [2H, m]
        z = jnp.dot(w, s, preferred_element_type=jnp.float32)        # [4H, m]
        g = jax.nn.sigmoid(z)
        f_g = g[0 * H:1 * H, :]
        i_g = g[1 * H:2 * H, :]
        o_g = g[2 * H:3 * H, :]
        c_g = g[3 * H:4 * H, :]
        c = f_g * c + i_g * c_g
        h = o_g * jnp.tanh(c)
        x = h

    # Single lane-dense store: [h; c] stacked on the sublane axis.
    hc_out_ref[...] = jnp.concatenate([h, c], axis=0).astype(hc_out_ref.dtype)


@functools.partial(jax.jit, static_argnames=("num_layers",))
def lstm_forward(x, w_all, num_layers):
    """Faithful LSTM.forward with packed gate weights.

    x: [B, T, F] with F == hidden_size.  w_all: [4H, 2H] from pack_weights.
    Returns (y, (h, c)); y == h (as in the module).
    """
    B, T, F = x.shape
    H = F
    M = B * T

    LANE = 128
    m_pad = _round_up(M, LANE)
    n_chunks = m_pad // LANE

    # Tile selection: biggest multiple of 128 up to 1024 that divides m_pad
    # exactly (no over-padding compute), but keep >=2 tiles when there is
    # enough work so v7x's two TensorCores both get rows.
    tile_chunks = 1
    for t in range(1, min(8, n_chunks) + 1):
        if n_chunks % t == 0:
            tile_chunks = t
    if n_chunks >= 2 and n_chunks // tile_chunks < 2:
        for t in range(min(8, n_chunks // 2), 0, -1):
            if n_chunks % t == 0:
                tile_chunks = t
                break
    m_tile = tile_chunks * LANE

    # Layout plumbing in the wrapper: rows -> lanes.
    xT = x.reshape(M, F).T                               # [H, M]
    if m_pad != M:
        xT = jnp.pad(xT, ((0, 0), (0, m_pad - M)))       # padded rows are zeros

    kernel = functools.partial(lstm_fused_kernel, num_layers=num_layers, hidden=H)

    cost = pl.CostEstimate(
        flops=int(2 * M * (2 * H) * (4 * H) * num_layers),
        transcendentals=int(5 * H * M * num_layers),
        bytes_accessed=int(4 * (M * H + 2 * M * H + 4 * H * 2 * H)),
    )

    hc = pl.pallas_call(
        kernel,
        out_shape=jax.ShapeDtypeStruct((2 * H, m_pad), jnp.float32),
        grid_spec=pltpu.PrefetchScalarGridSpec(
            num_scalar_prefetch=0,
            grid=(m_pad // m_tile,),
            in_specs=[
                pl.BlockSpec((H, m_tile), lambda i: (0, i)),       # row tile (rows on lanes)
                pl.BlockSpec((4 * H, 2 * H), lambda i: (0, 0)),    # weights stay resident
            ],
            out_specs=pl.BlockSpec((2 * H, m_tile), lambda i: (0, i)),
        ),
        compiler_params=pltpu.CompilerParams(
            dimension_semantics=("parallel",),       # independent row tiles
            vmem_limit_bytes=32 * 1024 * 1024,
        ),
        cost_estimate=cost,
    )(xT, w_all)

    h = hc[:H, :M].T.reshape(B, T, F)
    c = hc[H:, :M].T.reshape(B, T, F)
    # Module returns (x, (h, c)) with x == h after the final layer.
    return h, (h, c)


def init_weights(key, input_size, hidden_size):
    """Deterministic nn.Linear-style init (uniform ±1/sqrt(fan_in)), bias=False.

    Stored as [in_features, out_features].
    Order per gate: (W_x, W_h) for forget, input, output, cell.
    """
    ws = []
    for _gate in range(4):
        for fan_in in (input_size, hidden_size):
            key, sub = jax.random.split(key)
            bound = 1.0 / jnp.sqrt(jnp.float32(fan_in))
            w = jax.random.uniform(sub, (fan_in, hidden_size), jnp.float32,
                                   minval=-bound, maxval=bound)
            ws.append(w)
    return tuple(ws)


def pack_weights(weights):
    """Pack into [4H, 2H]: rows = gates (f, i, o, c), columns = [Wx^T | Wh^T].

    One-time layout plumbing so the kernel does a single K=2H contraction.
    """
    wfx, wfh, wix, wih, wox, woh, wcx, wch = weights
    rows = [jnp.concatenate([wx.T, wh.T], axis=1)        # [H, 2H] per gate
            for wx, wh in ((wfx, wfh), (wix, wih), (wox, woh), (wcx, wch))]
    return jnp.concatenate(rows, axis=0)                 # [4H, 2H]


def lstm_forward_ref(x, weights, num_layers):
    """Pure-JAX reference, mirrors the PyTorch graph exactly (per-gate matmuls)."""
    B, T, F = x.shape
    x2 = x.reshape(B * T, F)
    h = jnp.zeros_like(x2)
    c = jnp.zeros_like(x2)
    (wfx, wfh, wix, wih, wox, woh, wcx, wch) = weights
    for _ in range(num_layers):
        f = jax.nn.sigmoid(x2 @ wfx + h @ wfh)
        i = jax.nn.sigmoid(x2 @ wix + h @ wih)
        o = jax.nn.sigmoid(x2 @ wox + h @ woh)
        g = jax.nn.sigmoid(x2 @ wcx + h @ wch)
        c = f * c + i * g
        h = o * jnp.tanh(c)
        x2 = h
    return x2.reshape(B, T, F), (h.reshape(B, T, F), c.reshape(B, T, F))


if __name__ == "__main__":
    batch, seq, hidden = 2, 8, 32
    input_size = hidden_size = hidden   # module only type-checks when these match
    num_layers = 3

    key = jax.random.PRNGKey(0)
    kx, kw = jax.random.split(key)
    x = jax.random.normal(kx, (batch, seq, input_size), dtype=jnp.float32)
    weights = init_weights(kw, input_size, hidden_size)
    w_all = pack_weights(weights)

    y, (h, c) = lstm_forward(x, w_all, num_layers)
    jax.block_until_ready((y, h, c))

    y_ref, (h_ref, c_ref) = lstm_forward_ref(x, weights, num_layers)
    assert jnp.allclose(y, y_ref, rtol=1e-5, atol=1e-5)
    assert jnp.allclose(h, h_ref, rtol=1e-5, atol=1e-5)
    assert jnp.allclose(c, c_ref, rtol=1e-5, atol=1e-5)

    print("KERNEL_OK")
</pallas_src>

<mosaic_0001>
module attributes {stable_mosaic.version = 11 : i64} {
  func.func @lstm_fused_kernel(%arg0: i32, %arg1: memref<32x128xf32, #tpu.memory_space<vmem>>, %arg2: memref<128x64xf32, #tpu.memory_space<vmem>>, %arg3: memref<64x128xf32, #tpu.memory_space<vmem>>) attributes {dimension_semantics = [#tpu.dimension_semantics<parallel>], iteration_bounds = array<i64: 1>, scalar_prefetch = 0 : i64, scratch_operands = 0 : i64, tpu.core_type = #tpu.core_type<tc>, window_params = [{transform_indices = @transform_0, window_bounds = array<i64: 32, 128>}, {pipeline_mode = #tpu.pipeline_mode<synchronous>, transform_indices = @transform_1, window_bounds = array<i64: 128, 64>}, {transform_indices = @transform_2, window_bounds = array<i64: 64, 128>}]} {
    %c0 = arith.constant 0 : index
    %c0_0 = arith.constant 0 : index
    %0 = vector.load %arg1[%c0, %c0_0] : memref<32x128xf32, #tpu.memory_space<vmem>>, vector<32x128xf32>
    %c0_1 = arith.constant 0 : index
    %c0_2 = arith.constant 0 : index
    %1 = vector.load %arg2[%c0_1, %c0_2] : memref<128x64xf32, #tpu.memory_space<vmem>>, vector<128x64xf32>
    %2 = vector.extract_strided_slice %1 {offsets = [0, 0], sizes = [128, 32], strides = [1, 1]} : vector<128x64xf32> to vector<128x32xf32>
    %cst = arith.constant dense<0.000000e+00> : vector<128x128xf32>
    %3 = tpu.matmul %2, %0, %cst {dimension_numbers = #tpu.dot_dimension_numbers<[1], [0], [0], [1], [0, 0, 1, 1], [], []>} : vector<128x32xf32>, vector<32x128xf32>, vector<128x128xf32> -> vector<128x128xf32>
    %4 = arith.negf %3 : vector<128x128xf32>
    %5 = math.exp %4 : vector<128x128xf32>
    %cst_3 = arith.constant 1.000000e+00 : f32
    %6 = vector.broadcast %cst_3 : f32 to vector<128x128xf32>
    %7 = arith.addf %6, %5 : vector<128x128xf32>
    %8 = arith.divf %6, %7 : vector<128x128xf32>
    %9 = vector.extract_strided_slice %8 {offsets = [32, 0], sizes = [32, 128], strides = [1, 1]} : vector<128x128xf32> to vector<32x128xf32>
    %10 = vector.extract_strided_slice %8 {offsets = [64, 0], sizes = [32, 128], strides = [1, 1]} : vector<128x128xf32> to vector<32x128xf32>
    %11 = vector.extract_strided_slice %8 {offsets = [96, 0], sizes = [32, 128], strides = [1, 1]} : vector<128x128xf32> to vector<32x128xf32>
    %12 = arith.mulf %9, %11 : vector<32x128xf32>
    %13 = math.tanh %12 : vector<32x128xf32>
    %14 = arith.mulf %10, %13 : vector<32x128xf32>
    %15 = tpu.concatenate %14, %14 in 0 : vector<32x128xf32>, vector<32x128xf32> -> vector<64x128xf32>
    %cst_4 = arith.constant dense<0.000000e+00> : vector<128x128xf32>
    %16 = tpu.matmul %1, %15, %cst_4 {dimension_numbers = #tpu.dot_dimension_numbers<[1], [0], [0], [1], [0, 0, 1, 1], [], []>} : vector<128x64xf32>, vector<64x128xf32>, vector<128x128xf32> -> vector<128x128xf32>
    %17 = arith.negf %16 : vector<128x128xf32>
    %18 = math.exp %17 : vector<128x128xf32>
    %cst_5 = arith.constant 1.000000e+00 : f32
    %19 = vector.broadcast %cst_5 : f32 to vector<128x128xf32>
    %20 = arith.addf %19, %18 : vector<128x128xf32>
    %21 = arith.divf %19, %20 : vector<128x128xf32>
    %22 = vector.extract_strided_slice %21 {offsets = [0, 0], sizes = [32, 128], strides = [1, 1]} : vector<128x128xf32> to vector<32x128xf32>
    %23 = vector.extract_strided_slice %21 {offsets = [32, 0], sizes = [32, 128], strides = [1, 1]} : vector<128x128xf32> to vector<32x128xf32>
    %24 = vector.extract_strided_slice %21 {offsets = [64, 0], sizes = [32, 128], strides = [1, 1]} : vector<128x128xf32> to vector<32x128xf32>
    %25 = vector.extract_strided_slice %21 {offsets = [96, 0], sizes = [32, 128], strides = [1, 1]} : vector<128x128xf32> to vector<32x128xf32>
    %26 = arith.mulf %22, %12 : vector<32x128xf32>
    %27 = arith.mulf %23, %25 : vector<32x128xf32>
    %28 = arith.addf %26, %27 : vector<32x128xf32>
    %29 = math.tanh %28 : vector<32x128xf32>
    %30 = arith.mulf %24, %29 : vector<32x128xf32>
    %31 = tpu.concatenate %30, %30 in 0 : vector<32x128xf32>, vector<32x128xf32> -> vector<64x128xf32>
    %cst_6 = arith.constant dense<0.000000e+00> : vector<128x128xf32>
    %32 = tpu.matmul %1, %31, %cst_6 {dimension_numbers = #tpu.dot_dimension_numbers<[1], [0], [0], [1], [0, 0, 1, 1], [], []>} : vector<128x64xf32>, vector<64x128xf32>, vector<128x128xf32> -> vector<128x128xf32>
    %33 = arith.negf %32 : vector<128x128xf32>
    %34 = math.exp %33 : vector<128x128xf32>
    %cst_7 = arith.constant 1.000000e+00 : f32
    %35 = vector.broadcast %cst_7 : f32 to vector<128x128xf32>
    %36 = arith.addf %35, %34 : vector<128x128xf32>
    %37 = arith.divf %35, %36 : vector<128x128xf32>
    %38 = vector.extract_strided_slice %37 {offsets = [0, 0], sizes = [32, 128], strides = [1, 1]} : vector<128x128xf32> to vector<32x128xf32>
    %39 = vector.extract_strided_slice %37 {offsets = [32, 0], sizes = [32, 128], strides = [1, 1]} : vector<128x128xf32> to vector<32x128xf32>
    %40 = vector.extract_strided_slice %37 {offsets = [64, 0], sizes = [32, 128], strides = [1, 1]} : vector<128x128xf32> to vector<32x128xf32>
    %41 = vector.extract_strided_slice %37 {offsets = [96, 0], sizes = [32, 128], strides = [1, 1]} : vector<128x128xf32> to vector<32x128xf32>
    %42 = arith.mulf %38, %28 : vector<32x128xf32>
    %43 = arith.mulf %39, %41 : vector<32x128xf32>
    %44 = arith.addf %42, %43 : vector<32x128xf32>
    %45 = math.tanh %44 : vector<32x128xf32>
    %46 = arith.mulf %40, %45 : vector<32x128xf32>
    %47 = tpu.concatenate %46, %44 in 0 : vector<32x128xf32>, vector<32x128xf32> -> vector<64x128xf32>
    %c0_8 = arith.constant 0 : index
    %c0_9 = arith.constant 0 : index
    %48 = vector.load %arg3[%c0_8, %c0_9] : memref<64x128xf32, #tpu.memory_space<vmem>>, vector<64x128xf32>
    tpu.vector_store %arg3[%c0_8, %c0_9], %47 {strides = array<i32>} : memref<64x128xf32, #tpu.memory_space<vmem>>, vector<64x128xf32>,
    return
  }
  func.func @transform_0(%arg0: i32) -> (i32, i32) {
    %c0_i32 = arith.constant 0 : i32
    %c0_i32_0 = arith.constant 0 : i32
    return %c0_i32, %arg0 : i32, i32
  }
  func.func @transform_1(%arg0: i32) -> (i32, i32) {
    %c0_i32 = arith.constant 0 : i32
    %c0_i32_0 = arith.constant 0 : i32
    %c0_i32_1 = arith.constant 0 : i32
    return %c0_i32, %c0_i32_0 : i32, i32
  }
  func.func @transform_2(%arg0: i32) -> (i32, i32) {
    %c0_i32 = arith.constant 0 : i32
    %c0_i32_0 = arith.constant 0 : i32
    return %c0_i32, %arg0 : i32, i32
  }
}

</mosaic_0001>

<llo_original>
// kernel: lstm_forward.1
$region0: #{lstm_forward.1}
  #allocation0 [shape = 'u32[]', space=smem, size = 0x4, offset = 0x4, fixed_abs, tag = 'smem constant byte address 0x4 - core index']
  #allocation1 [shape = 'u32[144,128]{1,0:T(1,128)}', space=vmem, size = 0x12000, scoped, tag = 'internal scratch']
  %s0 = inlined_call_operand.vmem [shape: f32[32,128], index: 0, kind: input, shape index: {}]
  %s1 = inlined_call_operand.vmem [shape: f32[128,64], index: 1, kind: input, shape index: {}]
  %s2 = inlined_call_operand.vmem [shape: f32[64,128], index: 2, kind: output, shape index: {}]
  %s3 = sld [smem:[#allocation0]]
  $region18: #{lstm_forward.1} parent=0
    _
  %s5 = ssub.s32 1, %s3
  %s6 = scalar_select 0, %s5, %s3
  // Predicated region
  $region2: #{lstm_forward.1} parent=0 // pred_check
    _
  $region3: #{lstm_forward.1} parent=0 // pred_check_branch
    %8 = sbr.rel (0) target = $region5
  $region4: #{lstm_forward.1} parent=0 // pred_region
    _
  $region5: #{lstm_forward.1} parent=0 // pred_fallthru
    _
  // Predicated region
  $region6: #{lstm_forward.1} parent=0 // pred_check
    _
  $region7: #{lstm_forward.1} parent=0 // pred_check_branch
    %10 = sbr.rel (0) target = $region9
  $region8: #{lstm_forward.1} parent=0 // pred_region
    _
  $region9: #{lstm_forward.1} parent=0 // pred_fallthru
    _
  %v11 = vld [vmem:[%s0] sm:$0xff]
  %v12 = vld [vmem:[%s0 + $0x8] sm:$0xff]
  %v13 = vld [vmem:[%s0 + $0x10] sm:$0xff]
  %v14 = vld [vmem:[%s0 + $0x18] sm:$0xff]
  %v15 = vld [vmem:[%s1] sm:$0xff]
  %v16 = vld [vmem:[%s1 + $0x8] sm:$0xff]
  %v17 = vld [vmem:[%s1 + $0x10] sm:$0xff]
  %v18 = vld [vmem:[%s1 + $0x18] sm:$0xff]
  %v19 = vld [vmem:[%s1 + $0x20] sm:$0xff]
  %v20 = vld [vmem:[%s1 + $0x28] sm:$0xff]
  %v21 = vld [vmem:[%s1 + $0x30] sm:$0xff]
  %v22 = vld [vmem:[%s1 + $0x38] sm:$0xff]
  %v23 = vld [vmem:[%s1 + $0x40] sm:$0xff]
  %v24 = vld [vmem:[%s1 + $0x48] sm:$0xff]
  %v25 = vld [vmem:[%s1 + $0x50] sm:$0xff]
  %v26 = vld [vmem:[%s1 + $0x58] sm:$0xff]
  %v27 = vld [vmem:[%s1 + $0x60] sm:$0xff]
  %v28 = vld [vmem:[%s1 + $0x68] sm:$0xff]
  %v29 = vld [vmem:[%s1 + $0x70] sm:$0xff]
  %v30 = vld [vmem:[%s1 + $0x78] sm:$0xff]
  %vm31 = vcmask 261120
  %v33 = vsel %vm31, %v15, 0
  %v36 = vsel %vm31, %v16, 0
  %v39 = vsel %vm31, %v17, 0
  %v42 = vsel %vm31, %v18, 0
  %v45 = vsel %vm31, %v19, 0
  %v48 = vsel %vm31, %v20, 0
  %v51 = vsel %vm31, %v21, 0
  %v54 = vsel %vm31, %v22, 0
  %v57 = vsel %vm31, %v23, 0
  %v60 = vsel %vm31, %v24, 0
  %v63 = vsel %vm31, %v25, 0
  %v66 = vsel %vm31, %v26, 0
  %v69 = vsel %vm31, %v27, 0
  %v72 = vsel %vm31, %v28, 0
  %v75 = vsel %vm31, %v29, 0
  %v78 = vsel %vm31, %v30, 0
  %80 = vmatprep.subr.mxu0 0.0
  %81 = vmatpush1.msra.mxu0 %v11
  %82 = vmatprep.subr.mxu0 0.0
  %83 = vmatpush1.msra.mxu0 %v12
  %84 = vmatprep.subr.mxu0 0.0
  %85 = vmatpush1.msra.mxu0 %v13
  %86 = vmatprep.subr.mxu0 0.0
  %87 = vmatpush1.msra.mxu0 %v14
  %88 = vmatprep.subr.mxu0 0.0
  %89 = vmatpush1.msra.mxu0 0.0
  %90 = vmatprep.subr.mxu0 0.0
  %91 = vmatpush1.msra.mxu0 0.0
  %92 = vmatprep.subr.mxu0 0.0
  %93 = vmatpush1.msra.mxu0 0.0
  %94 = vmatprep.subr.mxu0 0.0
  %95 = vmatpush1.msra.mxu0 0.0
  %96 = vmatprep.subr.mxu0 0.0
  %97 = vmatpush1.msra.mxu0 0.0
  %98 = vmatprep.subr.mxu0 0.0
  %99 = vmatpush1.msra.mxu0 0.0
  %100 = vmatprep.subr.mxu0 0.0
  %101 = vmatpush1.msra.mxu0 0.0
  %102 = vmatprep.subr.mxu0 0.0
  %103 = vmatpush1.msra.mxu0 0.0
  %104 = vmatprep.subr.mxu0 0.0
  %105 = vmatpush1.msra.mxu0 0.0
  %106 = vmatprep.subr.mxu0 0.0
  %107 = vmatpush1.msra.mxu0 0.0
  %108 = vmatprep.subr.mxu0 0.0
  %109 = vmatpush1.msra.mxu0 0.0
  %110 = vmatprep.subr.mxu0 0.0
  %111 = vmatpush1.msra.mxu0 0.0
  %112 = vmatprep.subr.mxu0 0.0
  %113 = vmatpush1.msra.mxu0 0.0
  %114 = vmatprep.subr.mxu0 0.0
  %115 = vmatpush1.msra.mxu0 0.0
  %116 = vmatprep.subr.mxu0 0.0
  %117 = vmatpush1.msra.mxu0 0.0
  %118 = vmatprep.subr.mxu0 0.0
  %119 = vmatpush1.msra.mxu0 0.0
  %120 = vmatprep.subr.mxu0 0.0
  %121 = vmatpush1.msra.mxu0 0.0
  %122 = vmatprep.subr.mxu0 0.0
  %123 = vmatpush1.msra.mxu0 0.0
  %124 = vmatprep.subr.mxu0 0.0
  %125 = vmatpush1.msra.mxu0 0.0
  %126 = vmatprep.subr.mxu0 0.0
  %127 = vmatpush1.msra.mxu0 0.0
  %128 = vmatprep.subr.mxu0 0.0
  %129 = vmatpush1.msra.mxu0 0.0
  %130 = vmatprep.subr.mxu0 0.0
  %131 = vmatpush1.msra.mxu0 0.0
  %132 = vmatprep.subr.mxu0 0.0
  %133 = vmatpush1.msra.mxu0 0.0
  %134 = vmatprep.subr.mxu0 0.0
  %135 = vmatpush1.msra.mxu0 0.0
  %136 = vmatprep.subr.mxu0 0.0
  %137 = vmatpush1.msra.mxu0 0.0
  %138 = vmatprep.subr.mxu0 0.0
  %139 = vmatpush1.msra.mxu0 0.0
  %140 = vmatprep.subr.mxu0 0.0
  %141 = vmatpush1.msra.mxu0 0.0
  %142 = vmatprep.subr.mxu0 0.0
  %143 = vmatpush1.msra.mxu0 0.0
  %144 = vmatprep.mubr.f32.mxu0 0.0
  %145 = vmatmul.mubr.f32.gmra.mrb[0].mxu0 %v33
  %v146 = vpop.f32.mrb[0].mxu0
  %v147 = vpop.f32.mrb[0].mxu0
  %148 = vmatprep.mubr.f32.mxu0 0.0
  %149 = vmatmul.mubr.f32.gmra.mrb[0].mxu0 %v36
  %v150 = vpop.f32.mrb[0].mxu0
  %v151 = vpop.f32.mrb[0].mxu0
  %152 = vmatprep.mubr.f32.mxu0 0.0
  %153 = vmatmul.mubr.f32.gmra.mrb[0].mxu0 %v39
  %v154 = vpop.f32.mrb[0].mxu0
  %v155 = vpop.f32.mrb[0].mxu0
  %156 = vmatprep.mubr.f32.mxu0 0.0
  %157 = vmatmul.mubr.f32.gmra.mrb[0].mxu0 %v42
  %v158 = vpop.f32.mrb[0].mxu0
  %v159 = vpop.f32.mrb[0].mxu0
  %160 = vmatprep.mubr.f32.mxu0 0.0
  %161 = vmatmul.mubr.f32.gmra.mrb[0].mxu0 %v45
  %v162 = vpop.f32.mrb[0].mxu0
  %v163 = vadd.f32 0.0, %v162
  %v164 = vpop.f32.mrb[0].mxu0
  %165 = vmatprep.mubr.f32.mxu0 0.0
  %166 = vmatmul.mubr.f32.gmra.mrb[0].mxu0 %v48
  %v167 = vpop.f32.mrb[0].mxu0
  %v168 = vadd.f32 0.0, %v167
  %v169 = vpop.f32.mrb[0].mxu0
  %170 = vmatprep.mubr.f32.mxu0 0.0
  %171 = vmatmul.mubr.f32.gmra.mrb[0].mxu0 %v51
  %v172 = vpop.f32.mrb[0].mxu0
  %v173 = vadd.f32 0.0, %v172
  %v174 = vpop.f32.mrb[0].mxu0
  %175 = vmatprep.mubr.f32.mxu0 0.0
  %176 = vmatmul.mubr.f32.gmra.mrb[0].mxu0 %v54
  %v177 = vpop.f32.mrb[0].mxu0
  %v178 = vadd.f32 0.0, %v177
  %v179 = vpop.f32.mrb[0].mxu0
  %180 = vmatprep.mubr.f32.mxu0 0.0
  %181 = vmatmul.mubr.f32.gmra.mrb[0].mxu0 %v57
  %v182 = vpop.f32.mrb[0].mxu0
  %v183 = vadd.f32 0.0, %v182
  %v184 = vpop.f32.mrb[0].mxu0
  %185 = vmatprep.mubr.f32.mxu0 0.0
  %186 = vmatmul.mubr.f32.gmra.mrb[0].mxu0 %v60
  %v187 = vpop.f32.mrb[0].mxu0
  %v188 = vadd.f32 0.0, %v187
  %v189 = vpop.f32.mrb[0].mxu0
  %190 = vmatprep.mubr.f32.mxu0 0.0
  %191 = vmatmul.mubr.f32.gmra.mrb[0].mxu0 %v63
  %v192 = vpop.f32.mrb[0].mxu0
  %v193 = vadd.f32 0.0, %v192
  %v194 = vpop.f32.mrb[0].mxu0
  %195 = vmatprep.mubr.f32.mxu0 0.0
  %196 = vmatmul.mubr.f32.gmra.mrb[0].mxu0 %v66
  %v197 = vpop.f32.mrb[0].mxu0
  %v198 = vadd.f32 0.0, %v197
  %v199 = vpop.f32.mrb[0].mxu0
  %200 = vmatprep.mubr.f32.mxu0 0.0
  %201 = vmatmul.mubr.f32.gmra.mrb[0].mxu0 %v69
  %v202 = vpop.f32.mrb[0].mxu0
  %v203 = vadd.f32 0.0, %v202
  %v204 = vpop.f32.mrb[0].mxu0
  %205 = vmatprep.mubr.f32.mxu0 0.0
  %206 = vmatmul.mubr.f32.gmra.mrb[0].mxu0 %v72
  %v207 = vpop.f32.mrb[0].mxu0
  %v208 = vadd.f32 0.0, %v207
  %v209 = vpop.f32.mrb[0].mxu0
  %210 = vmatprep.mubr.f32.mxu0 0.0
  %211 = vmatmul.mubr.f32.gmra.mrb[0].mxu0 %v75
  %v212 = vpop.f32.mrb[0].mxu0
  %v213 = vadd.f32 0.0, %v212
  %v214 = vpop.f32.mrb[0].mxu0
  %215 = vmatprep.mubr.f32.mxu0 0.0
  %216 = vmatmul.mubr.f32.gmra.mrb[0].mxu0 %v78
  %v217 = vpop.f32.mrb[0].mxu0
  %v218 = vadd.f32 0.0, %v217
  %v219 = vpop.f32.mrb[0].mxu0
  %220 = vdwg.mxu0
  %v221 = vxor.u32 %v163, 2147483648
  %v222 = vxor.u32 %v168, 2147483648
  %v223 = vxor.u32 %v173, 2147483648
  %v224 = vxor.u32 %v178, 2147483648
  %v225 = vxor.u32 %v183, 2147483648
  %v226 = vxor.u32 %v188, 2147483648
  %v227 = vxor.u32 %v193, 2147483648
  %v228 = vxor.u32 %v198, 2147483648
  %v229 = vxor.u32 %v203, 2147483648
  %v230 = vxor.u32 %v208, 2147483648
  %v231 = vxor.u32 %v213, 2147483648
  %v232 = vxor.u32 %v218, 2147483648
  %v233 = vmul.f32 %v221, 1.442695
  %v234 = vpow.pop %v233
  %v235 = vmul.f32 %v222, 1.442695
  %v236 = vpow.pop %v235
  %v237 = vmul.f32 %v223, 1.442695
  %v238 = vpow.pop %v237
  %v239 = vmul.f32 %v224, 1.442695
  %v240 = vpow.pop %v239
  %v241 = vmul.f32 %v225, 1.442695
  %v242 = vpow.pop %v241
  %v243 = vmul.f32 %v226, 1.442695
  %v244 = vpow.pop %v243
  %v245 = vmul.f32 %v227, 1.442695
  %v246 = vpow.pop %v245
  %v247 = vmul.f32 %v228, 1.442695
  %v248 = vpow.pop %v247
  %v249 = vmul.f32 %v229, 1.442695
  %v250 = vpow.pop %v249
  %v251 = vmul.f32 %v230, 1.442695
  %v252 = vpow.pop %v251
  %v253 = vmul.f32 %v231, 1.442695
  %v254 = vpow.pop %v253
  %v255 = vmul.f32 %v232, 1.442695
  %v256 = vpow.pop %v255
  %v257 = vadd.f32 %v234, 1.0
  %v258 = vadd.f32 %v236, 1.0
  %v259 = vadd.f32 %v238, 1.0
  %v260 = vadd.f32 %v240, 1.0
  %v261 = vadd.f32 %v242, 1.0
  %v262 = vadd.f32 %v244, 1.0
  %v263 = vadd.f32 %v246, 1.0
  %v264 = vadd.f32 %v248, 1.0
  %v265 = vadd.f32 %v250, 1.0
  %v266 = vadd.f32 %v252, 1.0
  %v267 = vadd.f32 %v254, 1.0
  %v268 = vadd.f32 %v256, 1.0
  %v269 = vrcp.pop %v257
  %v270 = vmul.f32 1.0, %v269
  %v271 = vrcp.pop %v258
  %v272 = vmul.f32 1.0, %v271
  %v273 = vrcp.pop %v259
  %v274 = vmul.f32 1.0, %v273
  %v275 = vrcp.pop %v260
  %v276 = vmul.f32 1.0, %v275
  %v277 = vrcp.pop %v261
  %v278 = vmul.f32 1.0, %v277
  %v279 = vrcp.pop %v262
  %v280 = vmul.f32 1.0, %v279
  %v281 = vrcp.pop %v263
  %v282 = vmul.f32 1.0, %v281
  %v283 = vrcp.pop %v264
  %v284 = vmul.f32 1.0, %v283
  %v285 = vrcp.pop %v265
  %v286 = vmul.f32 1.0, %v285
  %v287 = vrcp.pop %v266
  %v288 = vmul.f32 1.0, %v287
  %v289 = vrcp.pop %v267
  %v290 = vmul.f32 1.0, %v289
  %v291 = vrcp.pop %v268
  %v292 = vmul.f32 1.0, %v291
  %v293 = vmul.f32 %v270, %v286
  %v294 = vmul.f32 %v272, %v288
  %v295 = vmul.f32 %v274, %v290
  %v296 = vmul.f32 %v276, %v292
  %v297 = vtanh.pop %v293
  %v298 = vtanh.pop %v294
  %v299 = vtanh.pop %v295
  %v300 = vtanh.pop %v296
  %v301 = vmul.f32 %v278, %v297
  %v302 = vmul.f32 %v280, %v298
  %v303 = vmul.f32 %v282, %v299
  %v304 = vmul.f32 %v284, %v300
  %vm305 = vcmask 523264
  %v306 = vsel %vm305, %v15, 0
  %v308 = vsel %vm305, %v16, 0
  %v310 = vsel %vm305, %v17, 0
  %v312 = vsel %vm305, %v18, 0
  %v314 = vsel %vm305, %v19, 0
  %v316 = vsel %vm305, %v20, 0
  %v318 = vsel %vm305, %v21, 0
  %v320 = vsel %vm305, %v22, 0
  %v322 = vsel %vm305, %v23, 0
  %v324 = vsel %vm305, %v24, 0
  %v326 = vsel %vm305, %v25, 0
  %v328 = vsel %vm305, %v26, 0
  %v330 = vsel %vm305, %v27, 0
  %v332 = vsel %vm305, %v28, 0
  %v334 = vsel %vm305, %v29, 0
  %v336 = vsel %vm305, %v30, 0
  %338 = vmatprep.subr.mxu0 0.0
  %339 = vmatpush1.msra.mxu0 %v301
  %340 = vmatprep.subr.mxu0 0.0
  %341 = vmatpush1.msra.mxu0 %v302
  %342 = vmatprep.subr.mxu0 0.0
  %343 = vmatpush1.msra.mxu0 %v303
  %344 = vmatprep.subr.mxu0 0.0
  %345 = vmatpush1.msra.mxu0 %v304
  %346 = vmatprep.subr.mxu0 0.0
  %347 = vmatpush1.msra.mxu0 %v301
  %348 = vmatprep.subr.mxu0 0.0
  %349 = vmatpush1.msra.mxu0 %v302
  %350 = vmatprep.subr.mxu0 0.0
  %351 = vmatpush1.msra.mxu0 %v303
  %352 = vmatprep.subr.mxu0 0.0
  %353 = vmatpush1.msra.mxu0 %v304
  %354 = vmatprep.subr.mxu0 0.0
  %355 = vmatpush1.msra.mxu0 0.0
  %356 = vmatprep.subr.mxu0 0.0
  %357 = vmatpush1.msra.mxu0 0.0
  %358 = vmatprep.subr.mxu0 0.0
  %359 = vmatpush1.msra.mxu0 0.0
  %360 = vmatprep.subr.mxu0 0.0
  %361 = vmatpush1.msra.mxu0 0.0
  %362 = vmatprep.subr.mxu0 0.0
  %363 = vmatpush1.msra.mxu0 0.0
  %364 = vmatprep.subr.mxu0 0.0
  %365 = vmatpush1.msra.mxu0 0.0
  %366 = vmatprep.subr.mxu0 0.0
  %367 = vmatpush1.msra.mxu0 0.0
  %368 = vmatprep.subr.mxu0 0.0
  %369 = vmatpush1.msra.mxu0 0.0
  %370 = vmatprep.subr.mxu0 0.0
  %371 = vmatpush1.msra.mxu0 0.0
  %372 = vmatprep.subr.mxu0 0.0
  %373 = vmatpush1.msra.mxu0 0.0
  %374 = vmatprep.subr.mxu0 0.0
  %375 = vmatpush1.msra.mxu0 0.0
  %376 = vmatprep.subr.mxu0 0.0
  %377 = vmatpush1.msra.mxu0 0.0
  %378 = vmatprep.subr.mxu0 0.0
  %379 = vmatpush1.msra.mxu0 0.0
  %380 = vmatprep.subr.mxu0 0.0
  %381 = vmatpush1.msra.mxu0 0.0
  %382 = vmatprep.subr.mxu0 0.0
  %383 = vmatpush1.msra.mxu0 0.0
  %384 = vmatprep.subr.mxu0 0.0
  %385 = vmatpush1.msra.mxu0 0.0
  %386 = vmatprep.subr.mxu0 0.0
  %387 = vmatpush1.msra.mxu0 0.0
  %388 = vmatprep.subr.mxu0 0.0
  %389 = vmatpush1.msra.mxu0 0.0
  %390 = vmatprep.subr.mxu0 0.0
  %391 = vmatpush1.msra.mxu0 0.0
  %392 = vmatprep.subr.mxu0 0.0
  %393 = vmatpush1.msra.mxu0 0.0
  %394 = vmatprep.subr.mxu0 0.0
  %395 = vmatpush1.msra.mxu0 0.0
  %396 = vmatprep.subr.mxu0 0.0
  %397 = vmatpush1.msra.mxu0 0.0
  %398 = vmatprep.subr.mxu0 0.0
  %399 = vmatpush1.msra.mxu0 0.0
  %400 = vmatprep.subr.mxu0 0.0
  %401 = vmatpush1.msra.mxu0 0.0
  %402 = vmatprep.mubr.f32.mxu0 0.0
  %403 = vmatmul.mubr.f32.gmra.mrb[0].mxu0 %v306
  %v404 = vpop.f32.mrb[0].mxu0
  %v405 = vadd.f32 0.0, %v404
  %v406 = vpop.f32.mrb[0].mxu0
  %407 = vmatprep.mubr.f32.mxu0 0.0
  %408 = vmatmul.mubr.f32.gmra.mrb[0].mxu0 %v308
  %v409 = vpop.f32.mrb[0].mxu0
  %v410 = vadd.f32 0.0, %v409
  %v411 = vpop.f32.mrb[0].mxu0
  %412 = vmatprep.mubr.f32.mxu0 0.0
  %413 = vmatmul.mubr.f32.gmra.mrb[0].mxu0 %v310
  %v414 = vpop.f32.mrb[0].mxu0
  %v415 = vadd.f32 0.0, %v414
  %v416 = vpop.f32.mrb[0].mxu0
  %417 = vmatprep.mubr.f32.mxu0 0.0
  %418 = vmatmul.mubr.f32.gmra.mrb[0].mxu0 %v312
  %v419 = vpop.f32.mrb[0].mxu0
  %v420 = vadd.f32 0.0, %v419
  %v421 = vpop.f32.mrb[0].mxu0
  %422 = vmatprep.mubr.f32.mxu0 0.0
  %423 = vmatmul.mubr.f32.gmra.mrb[0].mxu0 %v314
  %v424 = vpop.f32.mrb[0].mxu0
  %v425 = vadd.f32 0.0, %v424
  %v426 = vpop.f32.mrb[0].mxu0
  %427 = vmatprep.mubr.f32.mxu0 0.0
  %428 = vmatmul.mubr.f32.gmra.mrb[0].mxu0 %v316
  %v429 = vpop.f32.mrb[0].mxu0
  %v430 = vadd.f32 0.0, %v429
  %v431 = vpop.f32.mrb[0].mxu0
  %432 = vmatprep.mubr.f32.mxu0 0.0
  %433 = vmatmul.mubr.f32.gmra.mrb[0].mxu0 %v318
  %v434 = vpop.f32.mrb[0].mxu0
  %v435 = vadd.f32 0.0, %v434
  %v436 = vpop.f32.mrb[0].mxu0
  %437 = vmatprep.mubr.f32.mxu0 0.0
  %438 = vmatmul.mubr.f32.gmra.mrb[0].mxu0 %v320
  %v439 = vpop.f32.mrb[0].mxu0
  %v440 = vadd.f32 0.0, %v439
  %v441 = vpop.f32.mrb[0].mxu0
  %442 = vmatprep.mubr.f32.mxu0 0.0
  %443 = vmatmul.mubr.f32.gmra.mrb[0].mxu0 %v322
  %v444 = vpop.f32.mrb[0].mxu0
  %v445 = vadd.f32 0.0, %v444
  %v446 = vpop.f32.mrb[0].mxu0
  %447 = vmatprep.mubr.f32.mxu0 0.0
  %448 = vmatmul.mubr.f32.gmra.mrb[0].mxu0 %v324
  %v449 = vpop.f32.mrb[0].mxu0
  %v450 = vadd.f32 0.0, %v449
  %v451 = vpop.f32.mrb[0].mxu0
  %452 = vmatprep.mubr.f32.mxu0 0.0
  %453 = vmatmul.mubr.f32.gmra.mrb[0].mxu0 %v326
  %v454 = vpop.f32.mrb[0].mxu0
  %v455 = vadd.f32 0.0, %v454
  %v456 = vpop.f32.mrb[0].mxu0
  %457 = vmatprep.mubr.f32.mxu0 0.0
  %458 = vmatmul.mubr.f32.gmra.mrb[0].mxu0 %v328
  %v459 = vpop.f32.mrb[0].mxu0
  %v460 = vadd.f32 0.0, %v459
  %v461 = vpop.f32.mrb[0].mxu0
  %462 = vmatprep.mubr.f32.mxu0 0.0
  %463 = vmatmul.mubr.f32.gmra.mrb[0].mxu0 %v330
  %v464 = vpop.f32.mrb[0].mxu0
  %v465 = vadd.f32 0.0, %v464
  %v466 = vpop.f32.mrb[0].mxu0
  %467 = vmatprep.mubr.f32.mxu0 0.0
  %468 = vmatmul.mubr.f32.gmra.mrb[0].mxu0 %v332
  %v469 = vpop.f32.mrb[0].mxu0
  %v470 = vadd.f32 0.0, %v469
  %v471 = vpop.f32.mrb[0].mxu0
  %472 = vmatprep.mubr.f32.mxu0 0.0
  %473 = vmatmul.mubr.f32.gmra.mrb[0].mxu0 %v334
  %v474 = vpop.f32.mrb[0].mxu0
  %v475 = vadd.f32 0.0, %v474
  %v476 = vpop.f32.mrb[0].mxu0
  %477 = vmatprep.mubr.f32.mxu0 0.0
  %478 = vmatmul.mubr.f32.gmra.mrb[0].mxu0 %v336
  %v479 = vpop.f32.mrb[0].mxu0
  %v480 = vadd.f32 0.0, %v479
  %v481 = vpop.f32.mrb[0].mxu0
  %482 = vdwg.mxu0
  %v483 = vxor.u32 %v405, 2147483648
  %v484 = vxor.u32 %v410, 2147483648
  %v485 = vxor.u32 %v415, 2147483648
  %v486 = vxor.u32 %v420, 2147483648
  %v487 = vxor.u32 %v425, 2147483648
  %v488 = vxor.u32 %v430, 2147483648
  %v489 = vxor.u32 %v435, 2147483648
  %v490 = vxor.u32 %v440, 2147483648
  %v491 = vxor.u32 %v445, 2147483648
  %v492 = vxor.u32 %v450, 2147483648
  %v493 = vxor.u32 %v455, 2147483648
  %v494 = vxor.u32 %v460, 2147483648
  %v495 = vxor.u32 %v465, 2147483648
  %v496 = vxor.u32 %v470, 2147483648
  %v497 = vxor.u32 %v475, 2147483648
  %v498 = vxor.u32 %v480, 2147483648
  %v499 = vmul.f32 %v483, 1.442695
  %v500 = vpow.pop %v499
  %v501 = vmul.f32 %v484, 1.442695
  %v502 = vpow.pop %v501
  %v503 = vmul.f32 %v485, 1.442695
  %v504 = vpow.pop %v503
  %v505 = vmul.f32 %v486, 1.442695
  %v506 = vpow.pop %v505
  %v507 = vmul.f32 %v487, 1.442695
  %v508 = vpow.pop %v507
  %v509 = vmul.f32 %v488, 1.442695
  %v510 = vpow.pop %v509
  %v511 = vmul.f32 %v489, 1.442695
  %v512 = vpow.pop %v511
  %v513 = vmul.f32 %v490, 1.442695
  %v514 = vpow.pop %v513
  %v515 = vmul.f32 %v491, 1.442695
  %v516 = vpow.pop %v515
  %v517 = vmul.f32 %v492, 1.442695
  %v518 = vpow.pop %v517
  %v519 = vmul.f32 %v493, 1.442695
  %v520 = vpow.pop %v519
  %v521 = vmul.f32 %v494, 1.442695
  %v522 = vpow.pop %v521
  %v523 = vmul.f32 %v495, 1.442695
  %v524 = vpow.pop %v523
  %v525 = vmul.f32 %v496, 1.442695
  %v526 = vpow.pop %v525
  %v527 = vmul.f32 %v497, 1.442695
  %v528 = vpow.pop %v527
  %v529 = vmul.f32 %v498, 1.442695
  %v530 = vpow.pop %v529
  %v531 = vadd.f32 %v500, 1.0
  %v532 = vadd.f32 %v502, 1.0
  %v533 = vadd.f32 %v504, 1.0
  %v534 = vadd.f32 %v506, 1.0
  %v535 = vadd.f32 %v508, 1.0
  %v536 = vadd.f32 %v510, 1.0
  %v537 = vadd.f32 %v512, 1.0
  %v538 = vadd.f32 %v514, 1.0
  %v539 = vadd.f32 %v516, 1.0
  %v540 = vadd.f32 %v518, 1.0
  %v541 = vadd.f32 %v520, 1.0
  %v542 = vadd.f32 %v522, 1.0
  %v543 = vadd.f32 %v524, 1.0
  %v544 = vadd.f32 %v526, 1.0
  %v545 = vadd.f32 %v528, 1.0
  %v546 = vadd.f32 %v530, 1.0
  %v547 = vrcp.pop %v531
  %v548 = vmul.f32 1.0, %v547
  %v549 = vrcp.pop %v532
  %v550 = vmul.f32 1.0, %v549
  %v551 = vrcp.pop %v533
  %v552 = vmul.f32 1.0, %v551
  %v553 = vrcp.pop %v534
  %v554 = vmul.f32 1.0, %v553
  %v555 = vrcp.pop %v535
  %v556 = vmul.f32 1.0, %v555
  %v557 = vrcp.pop %v536
  %v558 = vmul.f32 1.0, %v557
  %v559 = vrcp.pop %v537
  %v560 = vmul.f32 1.0, %v559
  %v561 = vrcp.pop %v538
  %v562 = vmul.f32 1.0, %v561
  %v563 = vrcp.pop %v539
  %v564 = vmul.f32 1.0, %v563
  %v565 = vrcp.pop %v540
  %v566 = vmul.f32 1.0, %v565
  %v567 = vrcp.pop %v541
  %v568 = vmul.f32 1.0, %v567
  %v569 = vrcp.pop %v542
  %v570 = vmul.f32 1.0, %v569
  %v571 = vrcp.pop %v543
  %v572 = vmul.f32 1.0, %v571
  %v573 = vrcp.pop %v544
  %v574 = vmul.f32 1.0, %v573
  %v575 = vrcp.pop %v545
  %v576 = vmul.f32 1.0, %v575
  %v577 = vrcp.pop %v546
  %v578 = vmul.f32 1.0, %v577
  %v579 = vmul.f32 %v548, %v293
  %v580 = vmul.f32 %v550, %v294
  %v581 = vmul.f32 %v552, %v295
  %v582 = vmul.f32 %v554, %v296
  %v583 = vmul.f32 %v556, %v572
  %v584 = vmul.f32 %v558, %v574
  %v585 = vmul.f32 %v560, %v576
  %v586 = vmul.f32 %v562, %v578
  %v587 = vadd.f32 %v579, %v583
  %v588 = vadd.f32 %v580, %v584
  %v589 = vadd.f32 %v581, %v585
  %v590 = vadd.f32 %v582, %v586
  %v591 = vtanh.pop %v587
  %v592 = vtanh.pop %v588
  %v593 = vtanh.pop %v589
  %v594 = vtanh.pop %v590
  %v595 = vmul.f32 %v564, %v591
  %v596 = vmul.f32 %v566, %v592
  %v597 = vmul.f32 %v568, %v593
  %v598 = vmul.f32 %v570, %v594
  %599 = vmatprep.subr.mxu0 0.0
  %600 = vmatpush1.msra.mxu0 %v595
  %601 = vmatprep.subr.mxu0 0.0
  %602 = vmatpush1.msra.mxu0 %v596
  %603 = vmatprep.subr.mxu0 0.0
  %604 = vmatpush1.msra.mxu0 %v597
  %605 = vmatprep.subr.mxu0 0.0
  %606 = vmatpush1.msra.mxu0 %v598
  %607 = vmatprep.subr.mxu0 0.0
  %608 = vmatpush1.msra.mxu0 %v595
  %609 = vmatprep.subr.mxu0 0.0
  %610 = vmatpush1.msra.mxu0 %v596
  %611 = vmatprep.subr.mxu0 0.0
  %612 = vmatpush1.msra.mxu0 %v597
  %613 = vmatprep.subr.mxu0 0.0
  %614 = vmatpush1.msra.mxu0 %v598
  %615 = vmatprep.subr.mxu0 0.0
  %616 = vmatpush1.msra.mxu0 0.0
  %617 = vmatprep.subr.mxu0 0.0
  %618 = vmatpush1.msra.mxu0 0.0
  %619 = vmatprep.subr.mxu0 0.0
  %620 = vmatpush1.msra.mxu0 0.0
  %621 = vmatprep.subr.mxu0 0.0
  %622 = vmatpush1.msra.mxu0 0.0
  %623 = vmatprep.subr.mxu0 0.0
  %624 = vmatpush1.msra.mxu0 0.0
  %625 = vmatprep.subr.mxu0 0.0
  %626 = vmatpush1.msra.mxu0 0.0
  %627 = vmatprep.subr.mxu0 0.0
  %628 = vmatpush1.msra.mxu0 0.0
  %629 = vmatprep.subr.mxu0 0.0
  %630 = vmatpush1.msra.mxu0 0.0
  %631 = vmatprep.subr.mxu0 0.0
  %632 = vmatpush1.msra.mxu0 0.0
  %633 = vmatprep.subr.mxu0 0.0
  %634 = vmatpush1.msra.mxu0 0.0
  %635 = vmatprep.subr.mxu0 0.0
  %636 = vmatpush1.msra.mxu0 0.0
  %637 = vmatprep.subr.mxu0 0.0
  %638 = vmatpush1.msra.mxu0 0.0
  %639 = vmatprep.subr.mxu0 0.0
  %640 = vmatpush1.msra.mxu0 0.0
  %641 = vmatprep.subr.mxu0 0.0
  %642 = vmatpush1.msra.mxu0 0.0
  %643 = vmatprep.subr.mxu0 0.0
  %644 = vmatpush1.msra.mxu0 0.0
  %645 = vmatprep.subr.mxu0 0.0
  %646 = vmatpush1.msra.mxu0 0.0
  %647 = vmatprep.subr.mxu0 0.0
  %648 = vmatpush1.msra.mxu0 0.0
  %649 = vmatprep.subr.mxu0 0.0
  %650 = vmatpush1.msra.mxu0 0.0
  %651 = vmatprep.subr.mxu0 0.0
  %652 = vmatpush1.msra.mxu0 0.0
  %653 = vmatprep.subr.mxu0 0.0
  %654 = vmatpush1.msra.mxu0 0.0
  %655 = vmatprep.subr.mxu0 0.0
  %656 = vmatpush1.msra.mxu0 0.0
  %657 = vmatprep.subr.mxu0 0.0
  %658 = vmatpush1.msra.mxu0 0.0
  %659 = vmatprep.subr.mxu0 0.0
  %660 = vmatpush1.msra.mxu0 0.0
  %661 = vmatprep.subr.mxu0 0.0
  %662 = vmatpush1.msra.mxu0 0.0
  %663 = vmatprep.mubr.f32.mxu0 0.0
  %664 = vmatmul.mubr.f32.gmra.mrb[0].mxu0 %v306
  %v665 = vpop.f32.mrb[0].mxu0
  %v666 = vadd.f32 0.0, %v665
  %v667 = vpop.f32.mrb[0].mxu0
  %668 = vmatprep.mubr.f32.mxu0 0.0
  %669 = vmatmul.mubr.f32.gmra.mrb[0].mxu0 %v308
  %v670 = vpop.f32.mrb[0].mxu0
  %v671 = vadd.f32 0.0, %v670
  %v672 = vpop.f32.mrb[0].mxu0
  %673 = vmatprep.mubr.f32.mxu0 0.0
  %674 = vmatmul.mubr.f32.gmra.mrb[0].mxu0 %v310
  %v675 = vpop.f32.mrb[0].mxu0
  %v676 = vadd.f32 0.0, %v675
  %v677 = vpop.f32.mrb[0].mxu0
  %678 = vmatprep.mubr.f32.mxu0 0.0
  %679 = vmatmul.mubr.f32.gmra.mrb[0].mxu0 %v312
  %v680 = vpop.f32.mrb[0].mxu0
  %v681 = vadd.f32 0.0, %v680
  %v682 = vpop.f32.mrb[0].mxu0
  %683 = vmatprep.mubr.f32.mxu0 0.0
  %684 = vmatmul.mubr.f32.gmra.mrb[0].mxu0 %v314
  %v685 = vpop.f32.mrb[0].mxu0
  %v686 = vadd.f32 0.0, %v685
  %v687 = vpop.f32.mrb[0].mxu0
  %688 = vmatprep.mubr.f32.mxu0 0.0
  %689 = vmatmul.mubr.f32.gmra.mrb[0].mxu0 %v316
  %v690 = vpop.f32.mrb[0].mxu0
  %v691 = vadd.f32 0.0, %v690
  %v692 = vpop.f32.mrb[0].mxu0
  %693 = vmatprep.mubr.f32.mxu0 0.0
  %694 = vmatmul.mubr.f32.gmra.mrb[0].mxu0 %v318
  %v695 = vpop.f32.mrb[0].mxu0
  %v696 = vadd.f32 0.0, %v695
  %v697 = vpop.f32.mrb[0].mxu0
  %698 = vmatprep.mubr.f32.mxu0 0.0
  %699 = vmatmul.mubr.f32.gmra.mrb[0].mxu0 %v320
  %v700 = vpop.f32.mrb[0].mxu0
  %v701 = vadd.f32 0.0, %v700
  %v702 = vpop.f32.mrb[0].mxu0
  %703 = vmatprep.mubr.f32.mxu0 0.0
  %704 = vmatmul.mubr.f32.gmra.mrb[0].mxu0 %v322
  %v705 = vpop.f32.mrb[0].mxu0
  %v706 = vadd.f32 0.0, %v705
  %v707 = vpop.f32.mrb[0].mxu0
  %708 = vmatprep.mubr.f32.mxu0 0.0
  %709 = vmatmul.mubr.f32.gmra.mrb[0].mxu0 %v324
  %v710 = vpop.f32.mrb[0].mxu0
  %v711 = vadd.f32 0.0, %v710
  %v712 = vpop.f32.mrb[0].mxu0
  %713 = vmatprep.mubr.f32.mxu0 0.0
  %714 = vmatmul.mubr.f32.gmra.mrb[0].mxu0 %v326
  %v715 = vpop.f32.mrb[0].mxu0
  %v716 = vadd.f32 0.0, %v715
  %v717 = vpop.f32.mrb[0].mxu0
  %718 = vmatprep.mubr.f32.mxu0 0.0
  %719 = vmatmul.mubr.f32.gmra.mrb[0].mxu0 %v328
  %v720 = vpop.f32.mrb[0].mxu0
  %v721 = vadd.f32 0.0, %v720
  %v722 = vpop.f32.mrb[0].mxu0
  %723 = vmatprep.mubr.f32.mxu0 0.0
  %724 = vmatmul.mubr.f32.gmra.mrb[0].mxu0 %v330
  %v725 = vpop.f32.mrb[0].mxu0
  %v726 = vadd.f32 0.0, %v725
  %v727 = vpop.f32.mrb[0].mxu0
  %728 = vmatprep.mubr.f32.mxu0 0.0
  %729 = vmatmul.mubr.f32.gmra.mrb[0].mxu0 %v332
  %v730 = vpop.f32.mrb[0].mxu0
  %v731 = vadd.f32 0.0, %v730
  %v732 = vpop.f32.mrb[0].mxu0
  %733 = vmatprep.mubr.f32.mxu0 0.0
  %734 = vmatmul.mubr.f32.gmra.mrb[0].mxu0 %v334
  %v735 = vpop.f32.mrb[0].mxu0
  %v736 = vadd.f32 0.0, %v735
  %v737 = vpop.f32.mrb[0].mxu0
  %738 = vmatprep.mubr.f32.mxu0 0.0
  %739 = vmatmul.mubr.f32.gmra.mrb[0].mxu0 %v336
  %v740 = vpop.f32.mrb[0].mxu0
  %v741 = vadd.f32 0.0, %v740
  %v742 = vpop.f32.mrb[0].mxu0
  %743 = vdwg.mxu0
  %v744 = vxor.u32 %v666, 2147483648
  %v745 = vxor.u32 %v671, 2147483648
  %v746 = vxor.u32 %v676, 2147483648
  %v747 = vxor.u32 %v681, 2147483648
  %v748 = vxor.u32 %v686, 2147483648
  %v749 = vxor.u32 %v691, 2147483648
  %v750 = vxor.u32 %v696, 2147483648
  %v751 = vxor.u32 %v701, 2147483648
  %v752 = vxor.u32 %v706, 2147483648
  %v753 = vxor.u32 %v711, 2147483648
  %v754 = vxor.u32 %v716, 2147483648
  %v755 = vxor.u32 %v721, 2147483648
  %v756 = vxor.u32 %v726, 2147483648
  %v757 = vxor.u32 %v731, 2147483648
  %v758 = vxor.u32 %v736, 2147483648
  %v759 = vxor.u32 %v741, 2147483648
  %v760 = vmul.f32 %v744, 1.442695
  %v761 = vpow.pop %v760
  %v762 = vmul.f32 %v745, 1.442695
  %v763 = vpow.pop %v762
  %v764 = vmul.f32 %v746, 1.442695
  %v765 = vpow.pop %v764
  %v766 = vmul.f32 %v747, 1.442695
  %v767 = vpow.pop %v766
  %v768 = vmul.f32 %v748, 1.442695
  %v769 = vpow.pop %v768
  %v770 = vmul.f32 %v749, 1.442695
  %v771 = vpow.pop %v770
  %v772 = vmul.f32 %v750, 1.442695
  %v773 = vpow.pop %v772
  %v774 = vmul.f32 %v751, 1.442695
  %v775 = vpow.pop %v774
  %v776 = vmul.f32 %v752, 1.442695
  %v777 = vpow.pop %v776
  %v778 = vmul.f32 %v753, 1.442695
  %v779 = vpow.pop %v778
  %v780 = vmul.f32 %v754, 1.442695
  %v781 = vpow.pop %v780
  %v782 = vmul.f32 %v755, 1.442695
  %v783 = vpow.pop %v782
  %v784 = vmul.f32 %v756, 1.442695
  %v785 = vpow.pop %v784
  %v786 = vmul.f32 %v757, 1.442695
  %v787 = vpow.pop %v786
  %v788 = vmul.f32 %v758, 1.442695
  %v789 = vpow.pop %v788
  %v790 = vmul.f32 %v759, 1.442695
  %v791 = vpow.pop %v790
  %v792 = vadd.f32 %v761, 1.0
  %v793 = vadd.f32 %v763, 1.0
  %v794 = vadd.f32 %v765, 1.0
  %v795 = vadd.f32 %v767, 1.0
  %v796 = vadd.f32 %v769, 1.0
  %v797 = vadd.f32 %v771, 1.0
  %v798 = vadd.f32 %v773, 1.0
  %v799 = vadd.f32 %v775, 1.0
  %v800 = vadd.f32 %v777, 1.0
  %v801 = vadd.f32 %v779, 1.0
  %v802 = vadd.f32 %v781, 1.0
  %v803 = vadd.f32 %v783, 1.0
  %v804 = vadd.f32 %v785, 1.0
  %v805 = vadd.f32 %v787, 1.0
  %v806 = vadd.f32 %v789, 1.0
  %v807 = vadd.f32 %v791, 1.0
  %v808 = vrcp.pop %v792
  %v809 = vmul.f32 1.0, %v808
  %v810 = vrcp.pop %v793
  %v811 = vmul.f32 1.0, %v810
  %v812 = vrcp.pop %v794
  %v813 = vmul.f32 1.0, %v812
  %v814 = vrcp.pop %v795
  %v815 = vmul.f32 1.0, %v814
  %v816 = vrcp.pop %v796
  %v817 = vmul.f32 1.0, %v816
  %v818 = vrcp.pop %v797
  %v819 = vmul.f32 1.0, %v818
  %v820 = vrcp.pop %v798
  %v821 = vmul.f32 1.0, %v820
  %v822 = vrcp.pop %v799
  %v823 = vmul.f32 1.0, %v822
  %v824 = vrcp.pop %v800
  %v825 = vmul.f32 1.0, %v824
  %v826 = vrcp.pop %v801
  %v827 = vmul.f32 1.0, %v826
  %v828 = vrcp.pop %v802
  %v829 = vmul.f32 1.0, %v828
  %v830 = vrcp.pop %v803
  %v831 = vmul.f32 1.0, %v830
  %v832 = vrcp.pop %v804
  %v833 = vmul.f32 1.0, %v832
  %v834 = vrcp.pop %v805
  %v835 = vmul.f32 1.0, %v834
  %v836 = vrcp.pop %v806
  %v837 = vmul.f32 1.0, %v836
  %v838 = vrcp.pop %v807
  %v839 = vmul.f32 1.0, %v838
  %v840 = vmul.f32 %v809, %v587
  %v841 = vmul.f32 %v811, %v588
  %v842 = vmul.f32 %v813, %v589
  %v843 = vmul.f32 %v815, %v590
  %v844 = vmul.f32 %v817, %v833
  %v845 = vmul.f32 %v819, %v835
  %v846 = vmul.f32 %v821, %v837
  %v847 = vmul.f32 %v823, %v839
  %v848 = vadd.f32 %v840, %v844
  %v849 = vadd.f32 %v841, %v845
  %v850 = vadd.f32 %v842, %v846
  %v851 = vadd.f32 %v843, %v847
  %v852 = vtanh.pop %v848
  %v853 = vtanh.pop %v849
  %v854 = vtanh.pop %v850
  %v855 = vtanh.pop %v851
  %v856 = vmul.f32 %v825, %v852
  %v857 = vmul.f32 %v827, %v853
  %v858 = vmul.f32 %v829, %v854
  %v859 = vmul.f32 %v831, %v855
  %860 = vst [vmem:[%s2] sm:$0xff] %v856
  %861 = vst [vmem:[%s2 + $0x8] sm:$0xff] %v857
  %862 = vst [vmem:[%s2 + $0x10] sm:$0xff] %v858
  %863 = vst [vmem:[%s2 + $0x18] sm:$0xff] %v859
  %864 = vst [vmem:[%s2 + $0x20] sm:$0xff] %v848
  %865 = vst [vmem:[%s2 + $0x28] sm:$0xff] %v849
  %866 = vst [vmem:[%s2 + $0x30] sm:$0xff] %v850
  %867 = vst [vmem:[%s2 + $0x38] sm:$0xff] %v851
  // Predicated region
  $region10: #{lstm_forward.1} parent=0 // pred_check
    _
  $region11: #{lstm_forward.1} parent=0 // pred_check_branch
    %869 = sbr.rel (0) target = $region13
  $region12: #{lstm_forward.1} parent=0 // pred_region
    _
  $region13: #{lstm_forward.1} parent=0 // pred_fallthru
    _
  // Predicated region
  $region14: #{lstm_forward.1} parent=0 // pred_check
    _
  $region15: #{lstm_forward.1} parent=0 // pred_check_branch
    %871 = sbr.rel (0) target = $region17
  $region16: #{lstm_forward.1} parent=0 // pred_region
    _
  $region17: #{lstm_forward.1} parent=0 // pred_fallthru
    _

</llo_original>
